<compile_context>
chip_gen: v7x
topology: tpu7x:2x2x1
jax: 0.10.0
libtpu: 0.0.40
codegen_flags: <defaults>
</compile_context>

<pallas_src>
import math

import jax
import jax.numpy as jnp
from jax.experimental import pallas as pl
from jax.experimental.pallas import tpu as pltpu


def _mine_kernel(inp_ref, w1_ref, b1_ref, w2_ref, b2_ref, w3_ref, b3_ref,
                 out_ref):
    # inp_ref: (2N, Dx+Dz); rows [0,N) are joint [x|z], rows [N,2N) are [x|z_marg]
    two_n = inp_ref.shape[0]
    n = two_n // 2
    inv_n = 1.0 / float(n)
    log_n = math.log(float(n))

    # Single fused T() pass over both the joint and marginal samples (MXU).
    h = (jnp.dot(inp_ref[...], w1_ref[...], preferred_element_type=jnp.float32)
         + b1_ref[...])
    h = jnp.maximum(h, 0.0)
    h = jnp.dot(h, w2_ref[...], preferred_element_type=jnp.float32) + b2_ref[...]
    h = jnp.maximum(h, 0.0)

    # fc3 (output width 1): VPU broadcast-mul + XLU lane reduce.
    t = jnp.sum(h * w3_ref[...], axis=-1, keepdims=True) + b3_ref[0]    # (2N, 1)

    t_joint = t[:n, :]    # (N, 1) — joint samples   (slice at sublane boundary)
    t_marg = t[n:, :]     # (N, 1) — marginal samples

    # -t : mean over the joint samples (sublane reduce).
    t_mean = jnp.sum(t_joint, keepdims=True) * inv_n                    # (1, 1)

    # second_term : numerically-stable logsumexp over the batch axis - log(N).
    m = jnp.max(t_marg, keepdims=True)                                  # (1, 1)
    lse = m + jnp.log(jnp.sum(jnp.exp(t_marg - m), keepdims=True)) - log_n

    loss = -t_mean + lse
    rm = jnp.exp(lse)     # running_mean after the first forward call (EMA init)

    out_ref[0] = loss[0, 0]
    out_ref[1] = rm[0, 0]


def mine_forward(x, z, z_marg, params):
    """Returns (loss, running_mean) as f32 scalars."""
    w1x, w1z, b1, w2, b2, w3, b3 = params

    # Host-side layout fusions (no extra kernel work):
    #   concat [x|z] and [x|z_marg] row-wise so T() runs once on 2N rows,
    #   stack [w1x; w1z] so fc1 is a single matmul,
    #   pass w3 transposed as a (1, H) row for the VPU/XLU fc3.
    inp = jnp.concatenate(
        [jnp.concatenate([x, z], axis=1),
         jnp.concatenate([x, z_marg], axis=1)], axis=0)          # (2N, Dx+Dz)
    w1 = jnp.concatenate([w1x, w1z], axis=0)                     # (Dx+Dz, H)
    w3_row = w3.T                                                # (1, H)
    b3_s = b3.reshape((1,)).astype(jnp.float32)                  # SMEM scalar

    vmem = pl.BlockSpec(memory_space=pltpu.MemorySpace.VMEM)
    smem = pl.BlockSpec(memory_space=pltpu.MemorySpace.SMEM)

    out = pl.pallas_call(
        _mine_kernel,
        out_shape=jax.ShapeDtypeStruct((2,), jnp.float32),
        in_specs=[vmem, vmem, vmem, vmem, vmem, vmem, smem],
        out_specs=smem,
    )(inp, w1, b1, w2, b2, w3_row, b3_s)
    return out[0], out[1]


def _reference(x, z, zm, params):
    w1x, w1z, b1, w2, b2, w3, b3 = params

    def T(xx, zz):
        h = jnp.maximum(xx @ w1x + zz @ w1z + b1, 0.0)
        h = jnp.maximum(h @ w2 + b2, 0.0)
        return h @ w3 + b3

    n = x.shape[0]
    t = jnp.mean(T(x, z))
    t_marg = T(x, zm)
    second = jax.scipy.special.logsumexp(t_marg, axis=0)[0] - math.log(n)
    return -t + second, jnp.exp(second)


if __name__ == "__main__":
    # Small shapes: batch N=8, x-dim=4, z-dim=4, hidden=32.
    N, DX, DZ, H = 8, 4, 4, 32

    key = jax.random.PRNGKey(0)
    kx, kz, kperm, k1, k2, k3, k4 = jax.random.split(key, 7)

    x = jax.random.normal(kx, (N, DX), dtype=jnp.float32)
    z = jax.random.normal(kz, (N, DZ), dtype=jnp.float32)
    # z_marg = z[randperm(N)] — done deterministically here (glue in plain JAX).
    perm = jax.random.permutation(kperm, N)
    z_marg = z[perm]

    # Deterministic parameter init for T (fc1x, fc1z, fc2, fc3).
    w1x = 0.1 * jax.random.normal(k1, (DX, H), dtype=jnp.float32)
    w1z = 0.1 * jax.random.normal(k2, (DZ, H), dtype=jnp.float32)
    b1 = jnp.zeros((1, H), dtype=jnp.float32)
    w2 = 0.1 * jax.random.normal(k3, (H, H), dtype=jnp.float32)
    b2 = jnp.zeros((1, H), dtype=jnp.float32)
    w3 = 0.1 * jax.random.normal(k4, (H, 1), dtype=jnp.float32)
    b3 = jnp.zeros((1, 1), dtype=jnp.float32)
    params = (w1x, w1z, b1, w2, b2, w3, b3)

    loss, running_mean = mine_forward(x, z, z_marg, params)
    jax.block_until_ready((loss, running_mean))

    ref_loss, ref_rm = _reference(x, z, z_marg, params)
    assert jnp.allclose(loss, ref_loss, atol=1e-5), (loss, ref_loss)
    assert jnp.allclose(running_mean, ref_rm, atol=1e-5), (running_mean, ref_rm)

    # TODO(synk): bias_toggle / later-step EMA running-mean updates and the
    # 'fdiv' branch are host-side state bookkeeping (mutating self.loss /
    # self.running_mean) and do not change this first forward value; only the
    # forward loss and the fresh running_mean are produced here.
    print("KERNEL_OK")
</pallas_src>

<mosaic_0001>
module attributes {stable_mosaic.version = 11 : i64} {
  func.func @_mine_kernel(%arg0: memref<16x8xf32, #tpu.memory_space<vmem>>, %arg1: memref<8x32xf32, #tpu.memory_space<vmem>>, %arg2: memref<1x32xf32, #tpu.memory_space<vmem>>, %arg3: memref<32x32xf32, #tpu.memory_space<vmem>>, %arg4: memref<1x32xf32, #tpu.memory_space<vmem>>, %arg5: memref<1x32xf32, #tpu.memory_space<vmem>>, %arg6: memref<1xf32, #tpu.memory_space<smem>>, %arg7: memref<2xf32, #tpu.memory_space<smem>>) attributes {dimension_semantics = [], scalar_prefetch = 0 : i64, scratch_operands = 0 : i64, tpu.core_type = #tpu.core_type<tc>} {
    %c0 = arith.constant 0 : index
    %c0_0 = arith.constant 0 : index
    %0 = vector.load %arg0[%c0, %c0_0] : memref<16x8xf32, #tpu.memory_space<vmem>>, vector<16x8xf32>
    %c0_1 = arith.constant 0 : index
    %c0_2 = arith.constant 0 : index
    %1 = vector.load %arg1[%c0_1, %c0_2] : memref<8x32xf32, #tpu.memory_space<vmem>>, vector<8x32xf32>
    %cst = arith.constant dense<0.000000e+00> : vector<16x32xf32>
    %2 = tpu.matmul %0, %1, %cst {dimension_numbers = #tpu.dot_dimension_numbers<[1], [0], [0], [1], [0, 0, 1, 1], [], []>} : vector<16x8xf32>, vector<8x32xf32>, vector<16x32xf32> -> vector<16x32xf32>
    %c0_3 = arith.constant 0 : index
    %c0_4 = arith.constant 0 : index
    %3 = vector.load %arg2[%c0_3, %c0_4] : memref<1x32xf32, #tpu.memory_space<vmem>>, vector<1x32xf32>
    %4 = vector.broadcast %3 : vector<1x32xf32> to vector<16x32xf32>
    %5 = arith.addf %2, %4 : vector<16x32xf32>
    %cst_5 = arith.constant 0.000000e+00 : f32
    %6 = vector.broadcast %cst_5 : f32 to vector<16x32xf32>
    %7 = arith.maximumf %5, %6 : vector<16x32xf32>
    %c0_6 = arith.constant 0 : index
    %c0_7 = arith.constant 0 : index
    %8 = vector.load %arg3[%c0_6, %c0_7] : memref<32x32xf32, #tpu.memory_space<vmem>>, vector<32x32xf32>
    %cst_8 = arith.constant dense<0.000000e+00> : vector<16x32xf32>
    %9 = tpu.matmul %7, %8, %cst_8 {dimension_numbers = #tpu.dot_dimension_numbers<[1], [0], [0], [1], [0, 0, 1, 1], [], []>} : vector<16x32xf32>, vector<32x32xf32>, vector<16x32xf32> -> vector<16x32xf32>
    %c0_9 = arith.constant 0 : index
    %c0_10 = arith.constant 0 : index
    %10 = vector.load %arg4[%c0_9, %c0_10] : memref<1x32xf32, #tpu.memory_space<vmem>>, vector<1x32xf32>
    %11 = vector.broadcast %10 : vector<1x32xf32> to vector<16x32xf32>
    %12 = arith.addf %9, %11 : vector<16x32xf32>
    %cst_11 = arith.constant 0.000000e+00 : f32
    %13 = vector.broadcast %cst_11 : f32 to vector<16x32xf32>
    %14 = arith.maximumf %12, %13 : vector<16x32xf32>
    %c0_12 = arith.constant 0 : index
    %c0_13 = arith.constant 0 : index
    %15 = vector.load %arg5[%c0_12, %c0_13] : memref<1x32xf32, #tpu.memory_space<vmem>>, vector<1x32xf32>
    %16 = vector.broadcast %15 : vector<1x32xf32> to vector<16x32xf32>
    %17 = arith.mulf %14, %16 : vector<16x32xf32>
    %cst_14 = arith.constant dense<0.000000e+00> : vector<16xf32>
    %18 = vector.multi_reduction <add>, %17, %cst_14 [1] : vector<16x32xf32> to vector<16xf32>
    %19 = vector.shape_cast %18 : vector<16xf32> to vector<16x1xf32>
    %c0_15 = arith.constant 0 : index
    %20 = memref.load %arg6[%c0_15] : memref<1xf32, #tpu.memory_space<smem>>
    %21 = vector.broadcast %20 : f32 to vector<16x1xf32>
    %22 = arith.addf %19, %21 : vector<16x1xf32>
    %23 = vector.extract_strided_slice %22 {offsets = [0, 0], sizes = [8, 1], strides = [1, 1]} : vector<16x1xf32> to vector<8x1xf32>
    %24 = vector.extract_strided_slice %22 {offsets = [8, 0], sizes = [8, 1], strides = [1, 1]} : vector<16x1xf32> to vector<8x1xf32>
    %25 = vector.shape_cast %23 : vector<8x1xf32> to vector<1x8x1xf32>
    %cst_16 = arith.constant dense<0.000000e+00> : vector<1xf32>
    %26 = vector.multi_reduction <add>, %25, %cst_16 [1, 2] : vector<1x8x1xf32> to vector<1xf32>
    %27 = vector.shape_cast %26 : vector<1xf32> to vector<1x1x1xf32>
    %28 = vector.extract %27[0, 0, 0] : f32 from vector<1x1x1xf32>
    %29 = vector.broadcast %28 : f32 to vector<1x1xf32>
    %cst_17 = arith.constant 1.250000e-01 : f32
    %30 = vector.broadcast %cst_17 : f32 to vector<1x1xf32>
    %31 = arith.mulf %29, %30 : vector<1x1xf32>
    %32 = vector.shape_cast %24 : vector<8x1xf32> to vector<1x8x1xf32>
    %cst_18 = arith.constant dense<0xFF800000> : vector<1xf32>
    %33 = vector.multi_reduction <maximumf>, %32, %cst_18 [1, 2] : vector<1x8x1xf32> to vector<1xf32>
    %34 = vector.shape_cast %33 : vector<1xf32> to vector<1x1x1xf32>
    %35 = vector.extract %34[0, 0, 0] : f32 from vector<1x1x1xf32>
    %36 = vector.broadcast %35 : f32 to vector<1x1xf32>
    %37 = vector.broadcast %36 : vector<1x1xf32> to vector<8x1xf32>
    %38 = arith.subf %24, %37 : vector<8x1xf32>
    %39 = math.exp %38 : vector<8x1xf32>
    %40 = vector.shape_cast %39 : vector<8x1xf32> to vector<1x8x1xf32>
    %cst_19 = arith.constant dense<0.000000e+00> : vector<1xf32>
    %41 = vector.multi_reduction <add>, %40, %cst_19 [1, 2] : vector<1x8x1xf32> to vector<1xf32>
    %42 = vector.shape_cast %41 : vector<1xf32> to vector<1x1x1xf32>
    %43 = vector.extract %42[0, 0, 0] : f32 from vector<1x1x1xf32>
    %44 = vector.broadcast %43 : f32 to vector<1x1xf32>
    %45 = math.log %44 : vector<1x1xf32>
    %46 = arith.addf %36, %45 : vector<1x1xf32>
    %cst_20 = arith.constant 2.07944155 : f32
    %47 = vector.broadcast %cst_20 : f32 to vector<1x1xf32>
    %48 = arith.subf %46, %47 : vector<1x1xf32>
    %cst_21 = arith.constant 0.000000e+00 : f32
    %49 = vector.broadcast %cst_21 : f32 to vector<1x1xf32>
    %50 = arith.subf %49, %31 : vector<1x1xf32>
    %51 = arith.addf %50, %48 : vector<1x1xf32>
    %52 = math.exp %48 : vector<1x1xf32>
    %53 = vector.extract %51[0, 0] : f32 from vector<1x1xf32>
    %c0_22 = arith.constant 0 : index
    %54 = memref.load %arg7[%c0_22] : memref<2xf32, #tpu.memory_space<smem>>
    memref.store %53, %arg7[%c0_22] : memref<2xf32, #tpu.memory_space<smem>>
    %55 = vector.extract %52[0, 0] : f32 from vector<1x1xf32>
    %c1 = arith.constant 1 : index
    %56 = memref.load %arg7[%c1] : memref<2xf32, #tpu.memory_space<smem>>
    memref.store %55, %arg7[%c1] : memref<2xf32, #tpu.memory_space<smem>>
    return
  }
}

</mosaic_0001>

<llo_original>
// kernel: tpu_custom_call.1
$region0: #{tpu_custom_call.1}
  #allocation0 [shape = 'u32[]', space=smem, size = 0x4, offset = 0x4, fixed_abs, tag = 'smem constant byte address 0x4 - core index']
  #allocation1 [shape = 'u32[144,128]{1,0:T(1,128)}', space=vmem, size = 0x12000, scoped, tag = 'internal scratch']
  #allocation2 [shape = 'f32[1]{0:T(128)S(6)}', space=smem, size = 0x200, scoped, tag = 'scoped memory for tpu_custom_call.1']
  %s0 = inlined_call_operand.vmem [shape: f32[16,8], index: 0, kind: input, shape index: {}]
  %s1 = inlined_call_operand.hbm [shape: f32[8,32], index: 1, kind: input, shape index: {}]
  %s2 = inlined_call_operand.vmem [shape: f32[1,32], index: 2, kind: input, shape index: {}]
  %s3 = inlined_call_operand.vmem [shape: f32[32,32], index: 3, kind: input, shape index: {}]
  %s4 = inlined_call_operand.vmem [shape: f32[1,32], index: 4, kind: input, shape index: {}]
  %s5 = inlined_call_operand.vmem [shape: f32[1,32], index: 5, kind: input, shape index: {}]
  %s6 = inlined_call_operand.<no memory space> [shape: f32[1], index: 6, kind: input, shape index: {}]
  %s7 = inlined_call_operand.hbm [shape: f32[2], index: 7, kind: output, shape index: {}]
  %s8 = sld [smem:[#allocation0]]
  $region42: #{tpu_custom_call.1} parent=0
    _
  %s10 = ssub.s32 1, %s8
  %s11 = scalar_select 0, %s10, %s8
  %12 = sst [smem:[#allocation2]] %s6
  $region1: #{tpu_custom_call.1} parent=0
    #allocation3 [shape = 'u8[4096]{0}', space=vmem, size = 0x1000, scoped, tag = 'input window, operand 1, single buffered']
    #allocation4 [shape = 's32[1]{0}', space=sflag, size = 0x4, scoped, tag = 'scoped memory for tpu_custom_call.1']
    #allocation5 [shape = 's32[1]{0}', space=sflag, size = 0x4, scoped, tag = 'scoped memory for tpu_custom_call.1']
    #allocation6 [shape = 'u8[512]{0}', space=smem, size = 0x200, scoped, tag = 'output window, operand 0, single buffered']
    %13 = vsyncpa [#allocation4], 0
    %14 = vsyncpa [#allocation5], 0
    // Predicated region
    $region2: #{tpu_custom_call.1} parent=1 // pred_check
      _
    $region3: #{tpu_custom_call.1} parent=1 // pred_check_branch
      %16 = sbr.rel (0) target = $region5
    $region4: #{tpu_custom_call.1} parent=1 // pred_region
      _
    $region5: #{tpu_custom_call.1} parent=1 // pred_fallthru
      _
    // Predicated region
    $region6: #{tpu_custom_call.1} parent=1 // pred_check
      _
    $region7: #{tpu_custom_call.1} parent=1 // pred_check_branch
      %18 = sbr.rel (0) target = $region9
    $region8: #{tpu_custom_call.1} parent=1 // pred_region
      %s20 = ssub.s32 128, 128
      %21 = vsyncadd [#allocation4], %s20
      %s23 = sshll.u32 [#allocation3], 4
      %s24 = int_to_ptr.vmem [resolvable:$true] %s23
      %26 = dma.hbm_to_vmem [thread:$0]  %s1, 128, %s24, [#allocation4]
    $region9: #{tpu_custom_call.1} parent=1 // pred_fallthru
      _
    // Predicated region
    $region10: #{tpu_custom_call.1} parent=1 // pred_check
      _
    $region11: #{tpu_custom_call.1} parent=1 // pred_check_branch
      %28 = sbr.rel (0) target = $region13
    $region12: #{tpu_custom_call.1} parent=1 // pred_region
      _
    $region13: #{tpu_custom_call.1} parent=1 // pred_fallthru
      _
    // Predicated region
    $region14: #{tpu_custom_call.1} parent=1 // pred_check
      _
    $region15: #{tpu_custom_call.1} parent=1 // pred_check_branch
      %30 = sbr.rel (0) target = $region17
    $region16: #{tpu_custom_call.1} parent=1 // pred_region
      _
    $region17: #{tpu_custom_call.1} parent=1 // pred_fallthru
      _
    // Predicated region
    $region18: #{tpu_custom_call.1} parent=1 // pred_check
      _
    $region19: #{tpu_custom_call.1} parent=1 // pred_check_branch
      %32 = sbr.rel (0) target = $region21
    $region20: #{tpu_custom_call.1} parent=1 // pred_region
      _
    $region21: #{tpu_custom_call.1} parent=1 // pred_fallthru
      _
    // Predicated region
    $region22: #{tpu_custom_call.1} parent=1 // pred_check
      _
    $region23: #{tpu_custom_call.1} parent=1 // pred_check_branch
      %34 = sbr.rel (0) target = $region25
    $region24: #{tpu_custom_call.1} parent=1 // pred_region
      _
    $region25: #{tpu_custom_call.1} parent=1 // pred_fallthru
      _
    // Predicated region
    $region26: #{tpu_custom_call.1} parent=1 // pred_check
      _
    $region27: #{tpu_custom_call.1} parent=1 // pred_check_branch
      %36 = sbr.rel (0) target = $region29
    $region28: #{tpu_custom_call.1} parent=1 // pred_region
      _
    $region29: #{tpu_custom_call.1} parent=1 // pred_fallthru
      _
    // Predicated region
    $region30: #{tpu_custom_call.1} parent=1 // pred_check
      _
    $region31: #{tpu_custom_call.1} parent=1 // pred_check_branch
      %38 = sbr.rel (0) target = $region33
    $region32: #{tpu_custom_call.1} parent=1 // pred_region
      %39 = dma.done [#allocation4], 128
    $region33: #{tpu_custom_call.1} parent=1 // pred_fallthru
      _
    %v40 = vld [vmem:[%s0] sm:$0xff]
    %v41 = vld [vmem:[%s0 + $0x8] sm:$0xff]
    %v42 = vld [vmem:[#allocation3] sm:$0xff]
    %v43 = vld [vmem:[%s2] sm:$0x1]
    %v45 = vlaneseq
    %v46 = vshrl.u32 %v45, 7
    %v47 = vsub.s32 0, %v46
    %v48 = vrot.slane %v43, %v47
    %vm50 = vcmask 64512
    %v52 = vsel %vm50, %v40, 0
    %v55 = vsel %vm50, %v41, 0
    %57 = vmatprep.subr.mxu0 0.0
    %58 = vmatpush1.msra.mxu0 %v42
    %59 = vmatprep.subr.mxu0 0.0
    %60 = vmatpush1.msra.mxu0 0.0
    %61 = vmatprep.subr.mxu0 0.0
    %62 = vmatpush1.msra.mxu0 0.0
    %63 = vmatprep.subr.mxu0 0.0
    %64 = vmatpush1.msra.mxu0 0.0
    %65 = vmatprep.subr.mxu0 0.0
    %66 = vmatpush1.msra.mxu0 0.0
    %67 = vmatprep.subr.mxu0 0.0
    %68 = vmatpush1.msra.mxu0 0.0
    %69 = vmatprep.subr.mxu0 0.0
    %70 = vmatpush1.msra.mxu0 0.0
    %71 = vmatprep.subr.mxu0 0.0
    %72 = vmatpush1.msra.mxu0 0.0
    %73 = vmatprep.subr.mxu0 0.0
    %74 = vmatpush1.msra.mxu0 0.0
    %75 = vmatprep.subr.mxu0 0.0
    %76 = vmatpush1.msra.mxu0 0.0
    %77 = vmatprep.subr.mxu0 0.0
    %78 = vmatpush1.msra.mxu0 0.0
    %79 = vmatprep.subr.mxu0 0.0
    %80 = vmatpush1.msra.mxu0 0.0
    %81 = vmatprep.subr.mxu0 0.0
    %82 = vmatpush1.msra.mxu0 0.0
    %83 = vmatprep.subr.mxu0 0.0
    %84 = vmatpush1.msra.mxu0 0.0
    %85 = vmatprep.subr.mxu0 0.0
    %86 = vmatpush1.msra.mxu0 0.0
    %87 = vmatprep.subr.mxu0 0.0
    %88 = vmatpush1.msra.mxu0 0.0
    %89 = vmatprep.subr.mxu0 0.0
    %90 = vmatpush1.msra.mxu0 0.0
    %91 = vmatprep.subr.mxu0 0.0
    %92 = vmatpush1.msra.mxu0 0.0
    %93 = vmatprep.subr.mxu0 0.0
    %94 = vmatpush1.msra.mxu0 0.0
    %95 = vmatprep.subr.mxu0 0.0
    %96 = vmatpush1.msra.mxu0 0.0
    %97 = vmatprep.subr.mxu0 0.0
    %98 = vmatpush1.msra.mxu0 0.0
    %99 = vmatprep.subr.mxu0 0.0
    %100 = vmatpush1.msra.mxu0 0.0
    %101 = vmatprep.subr.mxu0 0.0
    %102 = vmatpush1.msra.mxu0 0.0
    %103 = vmatprep.subr.mxu0 0.0
    %104 = vmatpush1.msra.mxu0 0.0
    %105 = vmatprep.subr.mxu0 0.0
    %106 = vmatpush1.msra.mxu0 0.0
    %107 = vmatprep.subr.mxu0 0.0
    %108 = vmatpush1.msra.mxu0 0.0
    %109 = vmatprep.subr.mxu0 0.0
    %110 = vmatpush1.msra.mxu0 0.0
    %111 = vmatprep.subr.mxu0 0.0
    %112 = vmatpush1.msra.mxu0 0.0
    %113 = vmatprep.subr.mxu0 0.0
    %114 = vmatpush1.msra.mxu0 0.0
    %115 = vmatprep.subr.mxu0 0.0
    %116 = vmatpush1.msra.mxu0 0.0
    %117 = vmatprep.subr.mxu0 0.0
    %118 = vmatpush1.msra.mxu0 0.0
    %119 = vmatprep.subr.mxu0 0.0
    %120 = vmatpush1.msra.mxu0 0.0
    %121 = vmatprep.mubr.f32.mxu0 0.0
    %122 = vmatmul.mubr.f32.gmra.mrb[0].mxu0 %v52
    %v123 = vpop.f32.mrb[0].mxu0
    %v124 = vadd.f32 %v48, %v123
    %v125 = vpop.f32.mrb[0].mxu0
    %126 = vmatprep.mubr.f32.mxu0 0.0
    %127 = vmatmul.mubr.f32.gmra.mrb[0].mxu0 %v55
    %v128 = vpop.f32.mrb[0].mxu0
    %v129 = vadd.f32 %v48, %v128
    %v130 = vpop.f32.mrb[0].mxu0
    %131 = vdwg.mxu0
    %v132 = vmax.f32 %v124, 0.0
    %v133 = vmax.f32 %v129, 0.0
    %v134 = vld [vmem:[%s3] sm:$0xff]
    %v135 = vld [vmem:[%s3 + $0x8] sm:$0xff]
    %v136 = vld [vmem:[%s3 + $0x10] sm:$0xff]
    %v137 = vld [vmem:[%s3 + $0x18] sm:$0xff]
    %v138 = vld [vmem:[%s4] sm:$0x1]
    %v140 = vlaneseq
    %v141 = vshrl.u32 %v140, 7
    %v142 = vsub.s32 0, %v141
    %v143 = vrot.slane %v138, %v142
    %vm145 = vcmask 261120
    %v147 = vsel %vm145, %v132, 0
    %v150 = vsel %vm145, %v133, 0
    %152 = vmatprep.subr.mxu0 0.0
    %153 = vmatpush1.msra.mxu0 %v134
    %154 = vmatprep.subr.mxu0 0.0
    %155 = vmatpush1.msra.mxu0 %v135
    %156 = vmatprep.subr.mxu0 0.0
    %157 = vmatpush1.msra.mxu0 %v136
    %158 = vmatprep.subr.mxu0 0.0
    %159 = vmatpush1.msra.mxu0 %v137
    %160 = vmatprep.subr.mxu0 0.0
    %161 = vmatpush1.msra.mxu0 0.0
    %162 = vmatprep.subr.mxu0 0.0
    %163 = vmatpush1.msra.mxu0 0.0
    %164 = vmatprep.subr.mxu0 0.0
    %165 = vmatpush1.msra.mxu0 0.0
    %166 = vmatprep.subr.mxu0 0.0
    %167 = vmatpush1.msra.mxu0 0.0
    %168 = vmatprep.subr.mxu0 0.0
    %169 = vmatpush1.msra.mxu0 0.0
    %170 = vmatprep.subr.mxu0 0.0
    %171 = vmatpush1.msra.mxu0 0.0
    %172 = vmatprep.subr.mxu0 0.0
    %173 = vmatpush1.msra.mxu0 0.0
    %174 = vmatprep.subr.mxu0 0.0
    %175 = vmatpush1.msra.mxu0 0.0
    %176 = vmatprep.subr.mxu0 0.0
    %177 = vmatpush1.msra.mxu0 0.0
    %178 = vmatprep.subr.mxu0 0.0
    %179 = vmatpush1.msra.mxu0 0.0
    %180 = vmatprep.subr.mxu0 0.0
    %181 = vmatpush1.msra.mxu0 0.0
    %182 = vmatprep.subr.mxu0 0.0
    %183 = vmatpush1.msra.mxu0 0.0
    %184 = vmatprep.subr.mxu0 0.0
    %185 = vmatpush1.msra.mxu0 0.0
    %186 = vmatprep.subr.mxu0 0.0
    %187 = vmatpush1.msra.mxu0 0.0
    %188 = vmatprep.subr.mxu0 0.0
    %189 = vmatpush1.msra.mxu0 0.0
    %190 = vmatprep.subr.mxu0 0.0
    %191 = vmatpush1.msra.mxu0 0.0
    %192 = vmatprep.subr.mxu0 0.0
    %193 = vmatpush1.msra.mxu0 0.0
    %194 = vmatprep.subr.mxu0 0.0
    %195 = vmatpush1.msra.mxu0 0.0
    %196 = vmatprep.subr.mxu0 0.0
    %197 = vmatpush1.msra.mxu0 0.0
    %198 = vmatprep.subr.mxu0 0.0
    %199 = vmatpush1.msra.mxu0 0.0
    %200 = vmatprep.subr.mxu0 0.0
    %201 = vmatpush1.msra.mxu0 0.0
    %202 = vmatprep.subr.mxu0 0.0
    %203 = vmatpush1.msra.mxu0 0.0
    %204 = vmatprep.subr.mxu0 0.0
    %205 = vmatpush1.msra.mxu0 0.0
    %206 = vmatprep.subr.mxu0 0.0
    %207 = vmatpush1.msra.mxu0 0.0
    %208 = vmatprep.subr.mxu0 0.0
    %209 = vmatpush1.msra.mxu0 0.0
    %210 = vmatprep.subr.mxu0 0.0
    %211 = vmatpush1.msra.mxu0 0.0
    %212 = vmatprep.subr.mxu0 0.0
    %213 = vmatpush1.msra.mxu0 0.0
    %214 = vmatprep.subr.mxu0 0.0
    %215 = vmatpush1.msra.mxu0 0.0
    %216 = vmatprep.mubr.f32.mxu0 0.0
    %217 = vmatmul.mubr.f32.gmra.mrb[0].mxu0 %v147
    %v218 = vpop.f32.mrb[0].mxu0
    %v219 = vadd.f32 %v143, %v218
    %v220 = vpop.f32.mrb[0].mxu0
    %221 = vmatprep.mubr.f32.mxu0 0.0
    %222 = vmatmul.mubr.f32.gmra.mrb[0].mxu0 %v150
    %v223 = vpop.f32.mrb[0].mxu0
    %v224 = vadd.f32 %v143, %v223
    %v225 = vpop.f32.mrb[0].mxu0
    %226 = vdwg.mxu0
    %v227 = vmax.f32 %v219, 0.0
    %v228 = vmax.f32 %v224, 0.0
    %v229 = vld [vmem:[%s5] sm:$0x1]
    %v231 = vlaneseq
    %v232 = vshrl.u32 %v231, 7
    %v233 = vsub.s32 0, %v232
    %v234 = vrot.slane %v229, %v233
    %v236 = vmul.f32 %v227, %v234
    %v237 = vmul.f32 %v228, %v234
    %v238 = vsel %vm145, %v236, 0.0
    %239 = vadd.xlane.f32.xlu0 %v238
    %v240 = vpop.xlane.xlu0 %239
    %v241 = vsel %vm145, %v237, 0.0
    %242 = vadd.xlane.f32.xlu0 %v241
    %v243 = vpop.xlane.xlu0 %242
    %s244 = sld [smem:[#allocation2]]
    %v245 = vstv %s244
    %v246 = vadd.f32 %v240, %v245
    %v247 = vadd.f32 %v243, %v245
    %vm248 = vcmask 7168
    %v249 = vsel %vm248, %v246, 0.0
    %250 = vadd.xlane.f32.xlu0 %v249
    %v251 = vpop.xlane.xlu0 %250
    %v252 = vrot.slane %v251, 4
    %v253 = vadd.f32 %v251, %v252
    %v254 = vrot.slane %v253, 2
    %v255 = vadd.f32 %v253, %v254
    %v256 = vrot.slane %v255, 1
    %v257 = vadd.f32 %v255, %v256
    %s258 = vtos %v257
    %v259 = vstv %s258
    %v260 = vmul.f32 %v259, 0.125
    %v261 = vrot.slane %v247, 4
    %v262 = vmax.f32 %v247, %v261
    %v263 = vrot.slane %v262, 2
    %v264 = vmax.f32 %v262, %v263
    %v265 = vrot.slane %v264, 1
    %v266 = vmax.f32 %v264, %v265
    %s267 = vtos %v266
    %v268 = vstv %s267
    %v269 = vsub.f32 %v247, %v268
    %v270 = vmul.f32 %v269, 1.442695
    %v271 = vpow.pop %v270
    %v272 = vsel %vm248, %v271, 0.0
    %273 = vadd.xlane.f32.xlu0 %v272
    %v274 = vpop.xlane.xlu0 %273
    %v275 = vrot.slane %v274, 4
    %v276 = vadd.f32 %v274, %v275
    %v277 = vrot.slane %v276, 2
    %v278 = vadd.f32 %v276, %v277
    %v279 = vrot.slane %v278, 1
    %v280 = vadd.f32 %v278, %v279
    %s281 = vtos %v280
    %v282 = vstv %s281
    %v283 = vlog2.pop %v282
    %v284 = vmul.f32 %v283, 0.6931472
    %v285 = vadd.f32 %v268, %v284
    %v286 = vsub.f32 %v285, 2.0794415
    %v287 = vsub.f32 0.0, %v260
    %v288 = vadd.f32 %v287, %v286
    %v289 = vmul.f32 %v286, 1.442695
    %v290 = vpow.pop %v289
    %s291 = vtos %v288
    %s292 = scalar_lea.smem [#allocation6], 0
    %293 = sst [smem:[%s292]] %s291
    %s294 = vtos %v290
    %s295 = scalar_lea.smem [#allocation6], 1
    %296 = sst [smem:[%s295]] %s294
    // Predicated region
    $region34: #{tpu_custom_call.1} parent=1 // pred_check
      _
    $region35: #{tpu_custom_call.1} parent=1 // pred_check_branch
      %298 = sbr.rel (0) target = $region37
    $region36: #{tpu_custom_call.1} parent=1 // pred_region
      %s300 = ssub.s32 16, 16
      %301 = vsyncadd [#allocation5], %s300
      %304 = dma.smem_to_hbm [#allocation6], 16, %s7, [#allocation5]
    $region37: #{tpu_custom_call.1} parent=1 // pred_fallthru
      _
    // Predicated region
    $region38: #{tpu_custom_call.1} parent=1 // pred_check
      _
    $region39: #{tpu_custom_call.1} parent=1 // pred_check_branch
      %306 = sbr.rel (0) target = $region41
    $region40: #{tpu_custom_call.1} parent=1 // pred_region
      %307 = dma.done [#allocation5], 16
    $region41: #{tpu_custom_call.1} parent=1 // pred_fallthru
      _
    %308 = sfence
    %309 = vsyncpa [#allocation4], 1
    %310 = vsyncpa [#allocation5], 1

</llo_original>
